<compile_context>
chip_gen: v6e
topology: v6e:2x2x1
jax: 0.10.0
libtpu: 0.0.40
codegen_flags: <defaults>
</compile_context>

<pallas_src>
import math
import functools

import jax
import jax.numpy as jnp
from jax.experimental import pallas as pl
from jax.experimental.pallas import tpu as pltpu


_SQRT_2_OVER_PI = 0.7978845608028654  # sqrt(2 / pi)


def _round_up(n, m):
    return ((n + m - 1) // m) * m


def _check_buffered_support():
    """One-time static feature check: does this JAX accept pipeline_mode=Buffered?"""
    if not hasattr(pl, "Buffered"):
        return False
    try:
        pl.BlockSpec((8, 128), lambda i: (0, 0), pipeline_mode=pl.Buffered(1))
    except TypeError:
        return False
    return True


_HAS_BUFFERED = _check_buffered_support()


def _device_kind():
    try:
        return jax.devices()[0].device_kind.lower()
    except Exception:
        return ""


def _vmem_limit_bytes(kind):
    """Scoped VMEM limit per chip generation (None -> leave compiler default)."""
    if ("v5" in kind) or ("v6" in kind):
        return 100 * 1024 * 1024      # 128 MiB physical VMEM
    if "v7" in kind:
        return 48 * 1024 * 1024       # 64 MiB physical VMEM per TensorCore
    return None


def _choose_row_tile(M, kind, small_weights):
    """Row tile: multiple of 8 sublanes; a multiple of the MXU width (256 on
    v6e/v7x, 128 on v5e) when M allows; and >= 2 grid steps per TensorCore
    (v7x has 2 TCs on the 'parallel' axis) so x/out DMAs pipeline behind the
    matmuls instead of being exposed."""
    sub = 8
    if "v5" in kind:
        align = 128
        tm = 512 if small_weights else 256   # bigger tiles amortize per-step cost on v5e
    else:
        align = 256
        tm = 256
    tm = min(tm, _round_up(M, sub))
    if tm >= align:
        tm = (tm // align) * align
        min_steps = 4 if "v7" in kind else 2
        while pl.cdiv(M, tm) < min_steps and tm >= 2 * align:
            tm -= align
    else:
        tm = _round_up(tm, sub)
    return max(tm, sub)


def _pick_hidden_tile(C, H, tm, x_bytes, w_bytes, out_bytes, budget):
    """Pick the hidden-dim tile.  Returns (block_h, single_buffer_weights).
    Prefers block_h == H (weights fetched once / resident); otherwise the
    largest multiple of 128 that fits the per-step VMEM byte budget, preferring
    divisors of H (no masked ragged tail)."""

    def footprint(th, wbuf):
        xb = 2 * tm * C * x_bytes                 # x tile (double-buffered)
        ob = 2 * tm * C * out_bytes               # out tile (double-buffered)
        wb = wbuf * 2 * C * th * w_bytes          # W1 (C,tH) + W2 (tH,C) tiles
        bb = 2 * th * 4 + C * 4                   # f32 biases
        acc = tm * C * 4                          # f32 accumulator scratch
        inter = tm * th * (4 + w_bytes)           # f32 GELU temp + cast copy
        return xb + ob + wb + bb + acc + inter

    if footprint(H, 2) <= budget:
        return H, False                           # resident, default buffering
    if _HAS_BUFFERED and footprint(H, 1) <= budget:
        return H, True                            # resident, single-buffered weights
    th = (H // 128) * 128
    fallback = None
    while th >= 128:
        if footprint(th, 2) <= budget:
            if H % th == 0:
                return th, False
            if fallback is None:
                fallback = th
        th -= 128
    if fallback is not None:
        return fallback, False
    return min(128, H), False


def _ffn_kernel(x_ref, w1_ref, b1_ref, w2_ref, b2_ref, o_ref, acc_ref,
                *, block_h, hidden):
    # x_ref:  (tm, C)        streamed row tile (native dtype)
    # w1_ref: (C, block_h)   first-layer weight column tile (in, out)
    # b1_ref: (1, block_h)   f32 bias tile
    # w2_ref: (block_h, C)   second-layer weight row tile (in, out)
    # b2_ref: (1, C)         f32 bias
    # o_ref:  (tm, C)
    # acc_ref:(tm, C) f32    VMEM accumulator across the hidden-dim grid axis
    h_idx = pl.program_id(1)

    @pl.when(h_idx == 0)
    def _():
        acc_ref[...] = jnp.zeros_like(acc_ref)

    # --- c_fc partial tile: x @ W1[:, h0:h0+tH] + b1 --- MXU, f32 accumulation.
    h = jnp.dot(x_ref[...], w1_ref[...], preferred_element_type=jnp.float32)
    h = h + b1_ref[...]

    # --- GELU(approximate='tanh') in f32 (VPU + EUP) ---
    h = 0.5 * h * (1.0 + jnp.tanh(_SQRT_2_OVER_PI * (h + 0.044715 * (h * h * h))))

    w2 = w2_ref[...]
    if hidden % block_h != 0:
        # Ragged hidden tail (static branch): zero both the activation columns
        # and the W2 rows past H so undefined padded data never reaches the
        # accumulator.
        valid = hidden - h_idx * block_h
        col = jax.lax.broadcasted_iota(jnp.int32, h.shape, 1)
        h = jnp.where(col < valid, h, 0.0)
        row = jax.lax.broadcasted_iota(jnp.int32, w2.shape, 0)
        w2 = jnp.where(row < valid, w2, jnp.zeros_like(w2))

    # --- c_proj partial: feed the MXU in the weight dtype, accumulate in f32.
    # (No explicit f32 scratch round trip; Mosaic places the cast temporary.)
    acc_ref[...] += jnp.dot(h.astype(w2.dtype), w2,
                            preferred_element_type=jnp.float32)

    @pl.when(h_idx == pl.num_programs(1) - 1)
    def _():
        o_ref[...] = (acc_ref[...] + b2_ref[...]).astype(o_ref.dtype)


@functools.partial(
    jax.jit,
    static_argnames=("tm", "block_h", "vmem_limit", "single_buffer_weights"))
def _ffn_call(x, w1, b1, w2, b2, *, tm, block_h, vmem_limit,
              single_buffer_weights):
    B, T, C = x.shape
    H = w1.shape[1]
    M = B * T

    # No host-side pad: cdiv grid, Pallas handles the ragged last row block.
    x2 = x.reshape(M, C)
    b1_2 = b1.astype(jnp.float32).reshape(1, H)   # pre-cast once (grid-invariant)
    b2_2 = b2.astype(jnp.float32).reshape(1, C)

    ni = pl.cdiv(M, tm)
    nh = pl.cdiv(H, block_h)

    def wspec(shape, index_map):
        # Weight/bias tiles; single-buffer them only when they are grid-invariant
        # (nh == 1) AND single-buffering was requested to fit the VMEM budget.
        if nh == 1 and single_buffer_weights and _HAS_BUFFERED:
            return pl.BlockSpec(shape, index_map, pipeline_mode=pl.Buffered(1))
        return pl.BlockSpec(shape, index_map)

    kernel = functools.partial(_ffn_kernel, block_h=block_h, hidden=H)

    weight_reads = 1 if nh == 1 else ni
    itemsize = x2.dtype.itemsize
    cost = pl.CostEstimate(
        flops=4 * M * C * H,            # two M*C*H matmuls, 2 flops per MAC
        transcendentals=M * H,          # tanh in the GELU
        bytes_accessed=(M * C * itemsize                       # x in
                        + weight_reads * (w1.size * w1.dtype.itemsize
                                          + w2.size * w2.dtype.itemsize)
                        + H * 4 + C * 4                        # biases
                        + M * C * itemsize),                   # out
    )

    cp_kwargs = dict(dimension_semantics=("parallel", "arbitrary"))
    if vmem_limit is not None:
        cp_kwargs["vmem_limit_bytes"] = vmem_limit

    out = pl.pallas_call(
        kernel,
        out_shape=jax.ShapeDtypeStruct((M, C), x2.dtype),
        grid_spec=pltpu.PrefetchScalarGridSpec(
            num_scalar_prefetch=0,
            grid=(ni, nh),
            in_specs=[
                pl.BlockSpec((tm, C), lambda i, h: (i, 0)),    # x rows stream
                wspec((C, block_h), lambda i, h: (0, h)),      # W1 column tile
                wspec((1, block_h), lambda i, h: (0, h)),      # b1 tile (f32)
                wspec((block_h, C), lambda i, h: (h, 0)),      # W2 row tile
                wspec((1, C), lambda i, h: (0, 0)),            # b2 (f32)
            ],
            out_specs=pl.BlockSpec((tm, C), lambda i, h: (i, 0)),
            scratch_shapes=[pltpu.VMEM((tm, C), jnp.float32)],  # f32 accumulator
        ),
        compiler_params=pltpu.CompilerParams(**cp_kwargs),
        cost_estimate=cost,
    )(x2, w1, b1_2, w2, b2_2)

    return out.reshape(B, T, C)


def feedforward_pallas(x, w1, b1, w2, b2, *, compute_dtype=None):
    """FeedForward forward pass.

    x:  (B, T, n_embd)
    w1: (n_embd, ff_hid_dim)  == c_fc.weight.T    b1: (ff_hid_dim,)
    w2: (ff_hid_dim, n_embd)  == c_proj.weight.T  b2: (n_embd,)
    compute_dtype: optional MXU operand dtype (e.g. jnp.bfloat16) for f32
      models; accumulation stays f32.  Default None keeps native dtype so the
      module's f32 semantics are preserved.
    """
    if compute_dtype is not None:
        x = x.astype(compute_dtype)
        w1 = w1.astype(compute_dtype)
        w2 = w2.astype(compute_dtype)

    B, T, C = x.shape
    H = w1.shape[1]
    M = B * T

    kind = _device_kind()
    vmem_limit = _vmem_limit_bytes(kind)
    budget = int(0.85 * (vmem_limit if vmem_limit is not None
                         else 32 * 1024 * 1024))

    x_bytes = jnp.dtype(x.dtype).itemsize
    w_bytes = jnp.dtype(w1.dtype).itemsize

    small_weights = 2 * 2 * C * H * w_bytes <= budget // 2
    tm = _choose_row_tile(M, kind, small_weights)
    block_h, single_buffer_weights = _pick_hidden_tile(
        C, H, tm, x_bytes, w_bytes, x_bytes, budget)

    # No block_until_ready here: keep dispatch asynchronous for callers.
    return _ffn_call(x, w1, b1, w2, b2, tm=tm, block_h=block_h,
                     vmem_limit=vmem_limit,
                     single_buffer_weights=single_buffer_weights)


def _reference(x, w1, b1, w2, b2):
    h = jnp.einsum("btc,ch->bth", x, w1) + b1
    c = math.sqrt(2.0 / math.pi)
    h = 0.5 * h * (1.0 + jnp.tanh(c * (h + 0.044715 * h ** 3)))
    return jnp.einsum("bth,hc->btc", h, w2) + b2


if __name__ == "__main__":
    # Small, lane-aligned demo config (C and H multiples of 128 per layout guidance).
    n_embd = 128
    ff_hid_dim = 256
    B, T = 2, 8

    key = jax.random.PRNGKey(0)
    kx, kw1, kb1, kw2, kb2 = jax.random.split(key, 5)

    # nn.Linear weight is (out, in); we store (in, out) so the kernel does x @ W.
    x = jax.random.normal(kx, (B, T, n_embd), dtype=jnp.float32)
    w1 = jax.random.normal(kw1, (n_embd, ff_hid_dim), dtype=jnp.float32) / math.sqrt(n_embd)
    b1 = jax.random.normal(kb1, (ff_hid_dim,), dtype=jnp.float32) * 0.02
    w2 = jax.random.normal(kw2, (ff_hid_dim, n_embd), dtype=jnp.float32) / math.sqrt(ff_hid_dim)
    b2 = jax.random.normal(kb2, (n_embd,), dtype=jnp.float32) * 0.02

    out = jax.block_until_ready(feedforward_pallas(x, w1, b1, w2, b2))
    ref = jax.block_until_ready(_reference(x, w1, b1, w2, b2))

    assert out.shape == (B, T, n_embd)
    max_err = float(jnp.max(jnp.abs(out - ref)))
    # Tolerance covers TPU default (bf16-pass) MXU precision differences between
    # the fused kernel and the XLA einsum reference on f32 inputs.
    assert jnp.allclose(out, ref, atol=2e-2, rtol=2e-2), (
        f"mismatch vs reference; max abs err = {max_err}")

    print("KERNEL_OK")
</pallas_src>

<mosaic_0001>
module attributes {stable_mosaic.version = 11 : i64} {
  func.func @_ffn_kernel(%arg0: i32, %arg1: i32, %arg2: memref<16x128xf32, #tpu.memory_space<vmem>>, %arg3: memref<128x256xf32, #tpu.memory_space<vmem>>, %arg4: memref<1x256xf32, #tpu.memory_space<vmem>>, %arg5: memref<256x128xf32, #tpu.memory_space<vmem>>, %arg6: memref<1x128xf32, #tpu.memory_space<vmem>>, %arg7: memref<16x128xf32, #tpu.memory_space<vmem>>, %arg8: memref<16x128xf32, #tpu.memory_space<vmem>>) attributes {dimension_semantics = [#tpu.dimension_semantics<parallel>, #tpu.dimension_semantics<arbitrary>], iteration_bounds = array<i64: 1, 1>, scalar_prefetch = 0 : i64, scratch_operands = 1 : i64, tpu.core_type = #tpu.core_type<tc>, window_params = [{transform_indices = @transform_0, window_bounds = array<i64: 16, 128>}, {transform_indices = @transform_1, window_bounds = array<i64: 128, 256>}, {transform_indices = @transform_2, window_bounds = array<i64: 1, 256>}, {transform_indices = @transform_3, window_bounds = array<i64: 256, 128>}, {pipeline_mode = #tpu.pipeline_mode<synchronous>, transform_indices = @transform_4, window_bounds = array<i64: 1, 128>}, {transform_indices = @transform_5, window_bounds = array<i64: 16, 128>}]} {
    %c0_i32 = arith.constant 0 : i32
    %0 = arith.cmpi eq, %arg1, %c0_i32 : i32
    %1 = arith.extui %0 : i1 to i32
    %c0_i32_0 = arith.constant 0 : i32
    %2 = arith.cmpi ne, %1, %c0_i32_0 : i32
    scf.if %2 {
      %cst_19 = arith.constant 0.000000e+00 : f32
      %30 = vector.broadcast %cst_19 : f32 to vector<16x128xf32>
      %c0_20 = arith.constant 0 : index
      %c0_21 = arith.constant 0 : index
      %31 = vector.load %arg8[%c0_20, %c0_21] : memref<16x128xf32, #tpu.memory_space<vmem>>, vector<16x128xf32>
      tpu.vector_store %arg8[%c0_20, %c0_21], %30 {strides = array<i32>} : memref<16x128xf32, #tpu.memory_space<vmem>>, vector<16x128xf32>,
    } else {
    }
    %c0 = arith.constant 0 : index
    %c0_1 = arith.constant 0 : index
    %3 = vector.load %arg2[%c0, %c0_1] : memref<16x128xf32, #tpu.memory_space<vmem>>, vector<16x128xf32>
    %c0_2 = arith.constant 0 : index
    %c0_3 = arith.constant 0 : index
    %4 = vector.load %arg3[%c0_2, %c0_3] : memref<128x256xf32, #tpu.memory_space<vmem>>, vector<128x256xf32>
    %cst = arith.constant dense<0.000000e+00> : vector<16x256xf32>
    %5 = tpu.matmul %3, %4, %cst {dimension_numbers = #tpu.dot_dimension_numbers<[1], [0], [0], [1], [0, 0, 1, 1], [], []>} : vector<16x128xf32>, vector<128x256xf32>, vector<16x256xf32> -> vector<16x256xf32>
    %c0_4 = arith.constant 0 : index
    %c0_5 = arith.constant 0 : index
    %6 = vector.load %arg4[%c0_4, %c0_5] : memref<1x256xf32, #tpu.memory_space<vmem>>, vector<1x256xf32>
    %7 = vector.broadcast %6 : vector<1x256xf32> to vector<16x256xf32>
    %8 = arith.addf %5, %7 : vector<16x256xf32>
    %cst_6 = arith.constant 5.000000e-01 : f32
    %9 = vector.broadcast %cst_6 : f32 to vector<16x256xf32>
    %10 = arith.mulf %9, %8 : vector<16x256xf32>
    %11 = arith.mulf %8, %8 : vector<16x256xf32>
    %12 = arith.mulf %11, %8 : vector<16x256xf32>
    %cst_7 = arith.constant 4.471500e-02 : f32
    %13 = vector.broadcast %cst_7 : f32 to vector<16x256xf32>
    %14 = arith.mulf %13, %12 : vector<16x256xf32>
    %15 = arith.addf %8, %14 : vector<16x256xf32>
    %cst_8 = arith.constant 0.797884583 : f32
    %16 = vector.broadcast %cst_8 : f32 to vector<16x256xf32>
    %17 = arith.mulf %16, %15 : vector<16x256xf32>
    %18 = math.tanh %17 : vector<16x256xf32>
    %cst_9 = arith.constant 1.000000e+00 : f32
    %19 = vector.broadcast %cst_9 : f32 to vector<16x256xf32>
    %20 = arith.addf %19, %18 : vector<16x256xf32>
    %21 = arith.mulf %10, %20 : vector<16x256xf32>
    %c0_10 = arith.constant 0 : index
    %c0_11 = arith.constant 0 : index
    %22 = vector.load %arg5[%c0_10, %c0_11] : memref<256x128xf32, #tpu.memory_space<vmem>>, vector<256x128xf32>
    %c0_12 = arith.constant 0 : index
    %c0_13 = arith.constant 0 : index
    %23 = vector.load %arg8[%c0_12, %c0_13] : memref<16x128xf32, #tpu.memory_space<vmem>>, vector<16x128xf32>
    %cst_14 = arith.constant dense<0.000000e+00> : vector<16x128xf32>
    %24 = tpu.matmul %21, %22, %cst_14 {dimension_numbers = #tpu.dot_dimension_numbers<[1], [0], [0], [1], [0, 0, 1, 1], [], []>} : vector<16x256xf32>, vector<256x128xf32>, vector<16x128xf32> -> vector<16x128xf32>
    %25 = arith.addf %23, %24 : vector<16x128xf32>
    %c0_15 = arith.constant 0 : index
    %c0_16 = arith.constant 0 : index
    %26 = vector.load %arg8[%c0_15, %c0_16] : memref<16x128xf32, #tpu.memory_space<vmem>>, vector<16x128xf32>
    tpu.vector_store %arg8[%c0_15, %c0_16], %25 {strides = array<i32>} : memref<16x128xf32, #tpu.memory_space<vmem>>, vector<16x128xf32>,
    %c0_i32_17 = arith.constant 0 : i32
    %27 = arith.cmpi eq, %arg1, %c0_i32_17 : i32
    %28 = arith.extui %27 : i1 to i32
    %c0_i32_18 = arith.constant 0 : i32
    %29 = arith.cmpi ne, %28, %c0_i32_18 : i32
    scf.if %29 {
      %c0_19 = arith.constant 0 : index
      %c0_20 = arith.constant 0 : index
      %30 = vector.load %arg8[%c0_19, %c0_20] : memref<16x128xf32, #tpu.memory_space<vmem>>, vector<16x128xf32>
      %c0_21 = arith.constant 0 : index
      %c0_22 = arith.constant 0 : index
      %31 = vector.load %arg6[%c0_21, %c0_22] : memref<1x128xf32, #tpu.memory_space<vmem>>, vector<1x128xf32>
      %32 = vector.broadcast %31 : vector<1x128xf32> to vector<16x128xf32>
      %33 = arith.addf %30, %32 : vector<16x128xf32>
      %c0_23 = arith.constant 0 : index
      %c0_24 = arith.constant 0 : index
      %34 = vector.load %arg7[%c0_23, %c0_24] : memref<16x128xf32, #tpu.memory_space<vmem>>, vector<16x128xf32>
      tpu.vector_store %arg7[%c0_23, %c0_24], %33 {strides = array<i32>} : memref<16x128xf32, #tpu.memory_space<vmem>>, vector<16x128xf32>,
    } else {
    }
    return
  }
  func.func @transform_0(%arg0: i32, %arg1: i32) -> (i32, i32) {
    %c0_i32 = arith.constant 0 : i32
    %c0_i32_0 = arith.constant 0 : i32
    return %arg0, %c0_i32 : i32, i32
  }
  func.func @transform_1(%arg0: i32, %arg1: i32) -> (i32, i32) {
    %c0_i32 = arith.constant 0 : i32
    %c0_i32_0 = arith.constant 0 : i32
    return %c0_i32, %arg1 : i32, i32
  }
  func.func @transform_2(%arg0: i32, %arg1: i32) -> (i32, i32) {
    %c0_i32 = arith.constant 0 : i32
    %c0_i32_0 = arith.constant 0 : i32
    return %c0_i32, %arg1 : i32, i32
  }
  func.func @transform_3(%arg0: i32, %arg1: i32) -> (i32, i32) {
    %c0_i32 = arith.constant 0 : i32
    %c0_i32_0 = arith.constant 0 : i32
    return %arg1, %c0_i32 : i32, i32
  }
  func.func @transform_4(%arg0: i32, %arg1: i32) -> (i32, i32) {
    %c0_i32 = arith.constant 0 : i32
    %c0_i32_0 = arith.constant 0 : i32
    %c0_i32_1 = arith.constant 0 : i32
    return %c0_i32, %c0_i32_0 : i32, i32
  }
  func.func @transform_5(%arg0: i32, %arg1: i32) -> (i32, i32) {
    %c0_i32 = arith.constant 0 : i32
    %c0_i32_0 = arith.constant 0 : i32
    return %arg0, %c0_i32 : i32, i32
  }
}

</mosaic_0001>

<llo_original>
// kernel: _ffn_call.1
$region0: #{_ffn_call.1}
  #allocation0 [shape = 'u32[]', space=smem, size = 0x4, offset = 0x4, fixed_abs, tag = 'smem constant byte address 0x4 - core index']
  #allocation1 [shape = 'u32[144,128]{1,0:T(1,128)}', space=vmem, size = 0x12000, scoped, tag = 'internal scratch']
  #allocation2 [shape = 'f32[16,128]{1,0:T(8,128)}', space=vmem, size = 0x2000, scoped, tag = 'scratch operand']
  %s0 = inlined_call_operand.hbm [shape: f32[16,128], index: 0, kind: input, shape index: {}]
  %s1 = inlined_call_operand.hbm [shape: f32[128,256], index: 1, kind: input, shape index: {}]
  %s2 = inlined_call_operand.vmem [shape: f32[1,256], index: 2, kind: input, shape index: {}]
  %s3 = inlined_call_operand.hbm [shape: f32[256,128], index: 3, kind: input, shape index: {}]
  %s4 = inlined_call_operand.vmem [shape: f32[1,128], index: 4, kind: input, shape index: {}]
  %s5 = inlined_call_operand.hbm [shape: f32[16,128], index: 5, kind: output, shape index: {}]
  %s6 = sld [smem:[#allocation0]]
  $region50: #{_ffn_call.1} parent=0
    _
  %s8 = ssub.s32 1, %s6
  %s9 = scalar_select 0, %s8, %s6
  $region1: #{_ffn_call.1} parent=0
    #allocation3 [shape = 'u8[8192]{0}', space=vmem, size = 0x2000, scoped, tag = 'input window, operand 0, single buffered']
    #allocation4 [shape = 's32[1]{0}', space=sflag, size = 0x4, scoped, tag = 'scoped memory for _ffn_call.1']
    #allocation5 [shape = 's32[1]{0}', space=sflag, size = 0x4, scoped, tag = 'scoped memory for _ffn_call.1']
    #allocation6 [shape = 'u8[131072]{0}', space=vmem, size = 0x20000, scoped, tag = 'input window, operand 1, single buffered']
    #allocation7 [shape = 's32[1]{0}', space=sflag, size = 0x4, scoped, tag = 'scoped memory for _ffn_call.1']
    #allocation8 [shape = 'u8[131072]{0}', space=vmem, size = 0x20000, scoped, tag = 'input window, operand 3, single buffered']
    #allocation9 [shape = 'u8[8192]{0}', space=vmem, size = 0x2000, scoped, tag = 'output window, operand 0, single buffered']
    %10 = vsyncpa [#allocation4], 0
    %11 = vsyncpa [#allocation7], 0
    %12 = vsyncpa [#allocation5], 0
    // Predicated region
    $region2: #{_ffn_call.1} parent=1 // pred_check
      _
    $region3: #{_ffn_call.1} parent=1 // pred_check_branch
      %14 = sbr.rel (0) target = $region5
    $region4: #{_ffn_call.1} parent=1 // pred_region
      %s16 = ssub.s32 256, 256
      %17 = vsyncadd [#allocation4], %s16
      %s18 = sshll.u32 [#allocation3], 4
      %s19 = int_to_ptr.vmem [resolvable:$true] %s18
      %24 = dma.hbm_to_vmem [thread:$0]  %s0, 256, %s19, [#allocation4], 128, 128, 8
    $region5: #{_ffn_call.1} parent=1 // pred_fallthru
      _
    // Predicated region
    $region6: #{_ffn_call.1} parent=1 // pred_check
      _
    $region7: #{_ffn_call.1} parent=1 // pred_check_branch
      %26 = sbr.rel (0) target = $region9
    $region8: #{_ffn_call.1} parent=1 // pred_region
      %s28 = ssub.s32 4096, 4096
      %29 = vsyncadd [#allocation7], %s28
      %s30 = sshll.u32 [#allocation6], 4
      %s31 = int_to_ptr.vmem [resolvable:$true] %s30
      %36 = dma.hbm_to_vmem [thread:$0]  %s1, 4096, %s31, [#allocation7], 256, 256, 16
    $region9: #{_ffn_call.1} parent=1 // pred_fallthru
      _
    // Predicated region
    $region10: #{_ffn_call.1} parent=1 // pred_check
      _
    $region11: #{_ffn_call.1} parent=1 // pred_check_branch
      %38 = sbr.rel (0) target = $region13
    $region12: #{_ffn_call.1} parent=1 // pred_region
      _
    $region13: #{_ffn_call.1} parent=1 // pred_fallthru
      _
    // Predicated region
    $region14: #{_ffn_call.1} parent=1 // pred_check
      _
    $region15: #{_ffn_call.1} parent=1 // pred_check_branch
      %40 = sbr.rel (0) target = $region17
    $region16: #{_ffn_call.1} parent=1 // pred_region
      %s42 = ssub.s32 4096, 4096
      %43 = vsyncadd [#allocation7], %s42
      %s44 = sshll.u32 [#allocation8], 4
      %s45 = int_to_ptr.vmem [resolvable:$true] %s44
      %50 = dma.hbm_to_vmem [thread:$0]  %s3, 4096, %s45, [#allocation7], 128, 128, 8
    $region17: #{_ffn_call.1} parent=1 // pred_fallthru
      _
    // Predicated region
    $region18: #{_ffn_call.1} parent=1 // pred_check
      _
    $region19: #{_ffn_call.1} parent=1 // pred_check_branch
      %52 = sbr.rel (0) target = $region21
    $region20: #{_ffn_call.1} parent=1 // pred_region
      _
    $region21: #{_ffn_call.1} parent=1 // pred_fallthru
      _
    // Predicated region
    $region22: #{_ffn_call.1} parent=1 // pred_check
      _
    $region23: #{_ffn_call.1} parent=1 // pred_check_branch
      %54 = sbr.rel (0) target = $region25
    $region24: #{_ffn_call.1} parent=1 // pred_region
      %55 = dma.done [#allocation4], 256
    $region25: #{_ffn_call.1} parent=1 // pred_fallthru
      _
    // Predicated region
    $region26: #{_ffn_call.1} parent=1 // pred_check
      _
    $region27: #{_ffn_call.1} parent=1 // pred_check_branch
      %57 = sbr.rel (0) target = $region29
    $region28: #{_ffn_call.1} parent=1 // pred_region
      %58 = dma.done [#allocation7], 4096
    $region29: #{_ffn_call.1} parent=1 // pred_fallthru
      _
    // Predicated region
    $region30: #{_ffn_call.1} parent=1 // pred_check
      _
    $region31: #{_ffn_call.1} parent=1 // pred_check_branch
      %60 = sbr.rel (0) target = $region33
    $region32: #{_ffn_call.1} parent=1 // pred_region
      %61 = dma.done [#allocation7], 4096
    $region33: #{_ffn_call.1} parent=1 // pred_fallthru
      _
    %p62 = scmp.eq.s32.totalorder 0, 0
    // Predicated region
    $region34: #{_ffn_call.1} parent=1 // pred_check
      %p63 = pneg %p62
    $region35: #{_ffn_call.1} parent=1 // pred_check_branch
      %65 = sbr.rel (%p63) target = $region37
    $region36: #{_ffn_call.1} parent=1 // pred_region
      %66 = vst [vmem:[#allocation2] sm:$0xff] 0.0
      %67 = vst [vmem:[#allocation2 + $0x8] sm:$0xff] 0.0
    $region37: #{_ffn_call.1} parent=1 // pred_fallthru
      _
    %v68 = vld [vmem:[#allocation3] sm:$0xff]
    %v69 = vld [vmem:[#allocation3 + $0x8] sm:$0xff]
    %v70 = vld [vmem:[#allocation6] sm:$0xff]
    %v71 = vld [vmem:[#allocation6 + $0x8] sm:$0xff]
    %v72 = vld [vmem:[#allocation6 + $0x10] sm:$0xff]
    %v73 = vld [vmem:[#allocation6 + $0x18] sm:$0xff]
    %v74 = vld [vmem:[#allocation6 + $0x20] sm:$0xff]
    %v75 = vld [vmem:[#allocation6 + $0x28] sm:$0xff]
    %v76 = vld [vmem:[#allocation6 + $0x30] sm:$0xff]
    %v77 = vld [vmem:[#allocation6 + $0x38] sm:$0xff]
    %v78 = vld [vmem:[#allocation6 + $0x40] sm:$0xff]
    %v79 = vld [vmem:[#allocation6 + $0x48] sm:$0xff]
    %v80 = vld [vmem:[#allocation6 + $0x50] sm:$0xff]
    %v81 = vld [vmem:[#allocation6 + $0x58] sm:$0xff]
    %v82 = vld [vmem:[#allocation6 + $0x60] sm:$0xff]
    %v83 = vld [vmem:[#allocation6 + $0x68] sm:$0xff]
    %v84 = vld [vmem:[#allocation6 + $0x70] sm:$0xff]
    %v85 = vld [vmem:[#allocation6 + $0x78] sm:$0xff]
    %v86 = vld [vmem:[#allocation6 + $0x80] sm:$0xff]
    %v87 = vld [vmem:[#allocation6 + $0x88] sm:$0xff]
    %v88 = vld [vmem:[#allocation6 + $0x90] sm:$0xff]
    %v89 = vld [vmem:[#allocation6 + $0x98] sm:$0xff]
    %v90 = vld [vmem:[#allocation6 + $0xa0] sm:$0xff]
    %v91 = vld [vmem:[#allocation6 + $0xa8] sm:$0xff]
    %v92 = vld [vmem:[#allocation6 + $0xb0] sm:$0xff]
    %v93 = vld [vmem:[#allocation6 + $0xb8] sm:$0xff]
    %v94 = vld [vmem:[#allocation6 + $0xc0] sm:$0xff]
    %v95 = vld [vmem:[#allocation6 + $0xc8] sm:$0xff]
    %v96 = vld [vmem:[#allocation6 + $0xd0] sm:$0xff]
    %v97 = vld [vmem:[#allocation6 + $0xd8] sm:$0xff]
    %v98 = vld [vmem:[#allocation6 + $0xe0] sm:$0xff]
    %v99 = vld [vmem:[#allocation6 + $0xe8] sm:$0xff]
    %v100 = vld [vmem:[#allocation6 + $0xf0] sm:$0xff]
    %v101 = vld [vmem:[#allocation6 + $0xf8] sm:$0xff]
    %v102 = vld [vmem:[%s2] sm:$0x3]
    %v104 = vlaneseq
    %v105 = vshrl.u32 %v104, 7
    %v106 = vsub.s32 0, %v105
    %v107 = vrot.slane %v102, %v106
    %v108 = vlaneseq
    %v109 = vshrl.u32 %v108, 7
    %v110 = vsub.s32 1, %v109
    %v111 = vrot.slane %v102, %v110
    %114 = vmatprep.subr.mxu0 %v101
    %115 = vmatpush1.msra.mxu0 %v100
    %116 = vmatprep.subr.mxu0 %v99
    %117 = vmatpush1.msra.mxu0 %v98
    %118 = vmatprep.subr.mxu0 %v97
    %119 = vmatpush1.msra.mxu0 %v96
    %120 = vmatprep.subr.mxu0 %v95
    %121 = vmatpush1.msra.mxu0 %v94
    %122 = vmatprep.subr.mxu0 %v93
    %123 = vmatpush1.msra.mxu0 %v92
    %124 = vmatprep.subr.mxu0 %v91
    %125 = vmatpush1.msra.mxu0 %v90
    %126 = vmatprep.subr.mxu0 %v89
    %127 = vmatpush1.msra.mxu0 %v88
    %128 = vmatprep.subr.mxu0 %v87
    %129 = vmatpush1.msra.mxu0 %v86
    %130 = vmatprep.subr.mxu0 %v85
    %131 = vmatpush1.msra.mxu0 %v84
    %132 = vmatprep.subr.mxu0 %v83
    %133 = vmatpush1.msra.mxu0 %v82
    %134 = vmatprep.subr.mxu0 %v81
    %135 = vmatpush1.msra.mxu0 %v80
    %136 = vmatprep.subr.mxu0 %v79
    %137 = vmatpush1.msra.mxu0 %v78
    %138 = vmatprep.subr.mxu0 %v77
    %139 = vmatpush1.msra.mxu0 %v76
    %140 = vmatprep.subr.mxu0 %v75
    %141 = vmatpush1.msra.mxu0 %v74
    %142 = vmatprep.subr.mxu0 %v73
    %143 = vmatpush1.msra.mxu0 %v72
    %144 = vmatprep.subr.mxu0 %v71
    %145 = vmatpush1.msra.mxu0 %v70
    %146 = vmatprep.subr.mxu0 0.0
    %147 = vmatpush2.msra.mxu0 0.0
    %148 = vmatprep.subr.mxu0 0.0
    %149 = vmatpush2.msra.mxu0 0.0
    %150 = vmatprep.subr.mxu0 0.0
    %151 = vmatpush2.msra.mxu0 0.0
    %152 = vmatprep.subr.mxu0 0.0
    %153 = vmatpush2.msra.mxu0 0.0
    %154 = vmatprep.subr.mxu0 0.0
    %155 = vmatpush2.msra.mxu0 0.0
    %156 = vmatprep.subr.mxu0 0.0
    %157 = vmatpush2.msra.mxu0 0.0
    %158 = vmatprep.subr.mxu0 0.0
    %159 = vmatpush2.msra.mxu0 0.0
    %160 = vmatprep.subr.mxu0 0.0
    %161 = vmatpush2.msra.mxu0 0.0
    %162 = vmatprep.subr.mxu0 0.0
    %163 = vmatpush2.msra.mxu0 0.0
    %164 = vmatprep.subr.mxu0 0.0
    %165 = vmatpush2.msra.mxu0 0.0
    %166 = vmatprep.subr.mxu0 0.0
    %167 = vmatpush2.msra.mxu0 0.0
    %168 = vmatprep.subr.mxu0 0.0
    %169 = vmatpush2.msra.mxu0 0.0
    %170 = vmatprep.subr.mxu0 0.0
    %171 = vmatpush2.msra.mxu0 0.0
    %172 = vmatprep.subr.mxu0 0.0
    %173 = vmatpush2.msra.mxu0 0.0
    %174 = vmatprep.subr.mxu0 0.0
    %175 = vmatpush2.msra.mxu0 0.0
    %176 = vmatprep.subr.mxu0 0.0
    %177 = vmatpush2.msra.mxu0 0.0
    %178 = vmatprep.mubr.f32.mxu0 0.0
    %179 = vmatmul.mubr.f32.gmra.mxu0 %v68
    %v180 = vpop.f32.mrf.mxu0
    %v181 = vadd.f32 %v107, %v180
    %v182 = vpop.f32.mrf.mxu0
    %v183 = vadd.f32 %v111, %v182
    %184 = vmatprep.mubr.f32.mxu0 0.0
    %185 = vmatmul.mubr.f32.gmra.mxu0 %v69
    %v186 = vpop.f32.mrf.mxu0
    %v187 = vadd.f32 %v107, %v186
    %v188 = vpop.f32.mrf.mxu0
    %v189 = vadd.f32 %v111, %v188
    %190 = vdwg.mxu0
    %v191 = vmul.f32 %v181, 0.5
    %v192 = vmul.f32 %v183, 0.5
    %v193 = vmul.f32 %v187, 0.5
    %v194 = vmul.f32 %v189, 0.5
    %v195 = vmul.f32 %v181, %v181
    %v196 = vmul.f32 %v183, %v183
    %v197 = vmul.f32 %v187, %v187
    %v198 = vmul.f32 %v189, %v189
    %v199 = vmul.f32 %v195, %v181
    %v200 = vmul.f32 %v196, %v183
    %v201 = vmul.f32 %v197, %v187
    %v202 = vmul.f32 %v198, %v189
    %v203 = vmul.f32 %v199, 0.044715
    %v204 = vmul.f32 %v200, 0.044715
    %v205 = vmul.f32 %v201, 0.044715
    %v206 = vmul.f32 %v202, 0.044715
    %v207 = vadd.f32 %v181, %v203
    %v208 = vadd.f32 %v183, %v204
    %v209 = vadd.f32 %v187, %v205
    %v210 = vadd.f32 %v189, %v206
    %v211 = vmul.f32 %v207, 0.7978846
    %v212 = vmul.f32 %v208, 0.7978846
    %v213 = vmul.f32 %v209, 0.7978846
    %v214 = vmul.f32 %v210, 0.7978846
    %v215 = vtanh.pop %v211
    %v216 = vtanh.pop %v212
    %v217 = vtanh.pop %v213
    %v218 = vtanh.pop %v214
    %v219 = vadd.f32 %v215, 1.0
    %v220 = vadd.f32 %v216, 1.0
    %v221 = vadd.f32 %v217, 1.0
    %v222 = vadd.f32 %v218, 1.0
    %v223 = vmul.f32 %v191, %v219
    %v224 = vmul.f32 %v192, %v220
    %v225 = vmul.f32 %v193, %v221
    %v226 = vmul.f32 %v194, %v222
    %v227 = vld [vmem:[#allocation8] sm:$0xff]
    %v228 = vld [vmem:[#allocation8 + $0x8] sm:$0xff]
    %v229 = vld [vmem:[#allocation8 + $0x10] sm:$0xff]
    %v230 = vld [vmem:[#allocation8 + $0x18] sm:$0xff]
    %v231 = vld [vmem:[#allocation8 + $0x20] sm:$0xff]
    %v232 = vld [vmem:[#allocation8 + $0x28] sm:$0xff]
    %v233 = vld [vmem:[#allocation8 + $0x30] sm:$0xff]
    %v234 = vld [vmem:[#allocation8 + $0x38] sm:$0xff]
    %v235 = vld [vmem:[#allocation8 + $0x40] sm:$0xff]
    %v236 = vld [vmem:[#allocation8 + $0x48] sm:$0xff]
    %v237 = vld [vmem:[#allocation8 + $0x50] sm:$0xff]
    %v238 = vld [vmem:[#allocation8 + $0x58] sm:$0xff]
    %v239 = vld [vmem:[#allocation8 + $0x60] sm:$0xff]
    %v240 = vld [vmem:[#allocation8 + $0x68] sm:$0xff]
    %v241 = vld [vmem:[#allocation8 + $0x70] sm:$0xff]
    %v242 = vld [vmem:[#allocation8 + $0x78] sm:$0xff]
    %v243 = vld [vmem:[#allocation8 + $0x80] sm:$0xff]
    %v244 = vld [vmem:[#allocation8 + $0x88] sm:$0xff]
    %v245 = vld [vmem:[#allocation8 + $0x90] sm:$0xff]
    %v246 = vld [vmem:[#allocation8 + $0x98] sm:$0xff]
    %v247 = vld [vmem:[#allocation8 + $0xa0] sm:$0xff]
    %v248 = vld [vmem:[#allocation8 + $0xa8] sm:$0xff]
    %v249 = vld [vmem:[#allocation8 + $0xb0] sm:$0xff]
    %v250 = vld [vmem:[#allocation8 + $0xb8] sm:$0xff]
    %v251 = vld [vmem:[#allocation8 + $0xc0] sm:$0xff]
    %v252 = vld [vmem:[#allocation8 + $0xc8] sm:$0xff]
    %v253 = vld [vmem:[#allocation8 + $0xd0] sm:$0xff]
    %v254 = vld [vmem:[#allocation8 + $0xd8] sm:$0xff]
    %v255 = vld [vmem:[#allocation8 + $0xe0] sm:$0xff]
    %v256 = vld [vmem:[#allocation8 + $0xe8] sm:$0xff]
    %v257 = vld [vmem:[#allocation8 + $0xf0] sm:$0xff]
    %v258 = vld [vmem:[#allocation8 + $0xf8] sm:$0xff]
    %v259 = vld [vmem:[#allocation2] sm:$0xff]
    %v260 = vld [vmem:[#allocation2 + $0x8] sm:$0xff]
    %261 = vmatprep.subr.mxu0 0.0
    %262 = vmatpush1.msra.mxu0 %v242
    %263 = vmatprep.subr.mxu0 0.0
    %264 = vmatpush1.msra.mxu0 %v241
    %265 = vmatprep.subr.mxu0 0.0
    %266 = vmatpush1.msra.mxu0 %v240
    %267 = vmatprep.subr.mxu0 0.0
    %268 = vmatpush1.msra.mxu0 %v239
    %269 = vmatprep.subr.mxu0 0.0
    %270 = vmatpush1.msra.mxu0 %v238
    %271 = vmatprep.subr.mxu0 0.0
    %272 = vmatpush1.msra.mxu0 %v237
    %273 = vmatprep.subr.mxu0 0.0
    %274 = vmatpush1.msra.mxu0 %v236
    %275 = vmatprep.subr.mxu0 0.0
    %276 = vmatpush1.msra.mxu0 %v235
    %277 = vmatprep.subr.mxu0 0.0
    %278 = vmatpush1.msra.mxu0 %v234
    %279 = vmatprep.subr.mxu0 0.0
    %280 = vmatpush1.msra.mxu0 %v233
    %281 = vmatprep.subr.mxu0 0.0
    %282 = vmatpush1.msra.mxu0 %v232
    %283 = vmatprep.subr.mxu0 0.0
    %284 = vmatpush1.msra.mxu0 %v231
    %285 = vmatprep.subr.mxu0 0.0
    %286 = vmatpush1.msra.mxu0 %v230
    %287 = vmatprep.subr.mxu0 0.0
    %288 = vmatpush1.msra.mxu0 %v229
    %289 = vmatprep.subr.mxu0 0.0
    %290 = vmatpush1.msra.mxu0 %v228
    %291 = vmatprep.subr.mxu0 0.0
    %292 = vmatpush1.msra.mxu0 %v227
    %293 = vmatprep.subr.mxu0 0.0
    %294 = vmatpush2.msra.mxu0 %v258
    %295 = vmatprep.subr.mxu0 0.0
    %296 = vmatpush2.msra.mxu0 %v257
    %297 = vmatprep.subr.mxu0 0.0
    %298 = vmatpush2.msra.mxu0 %v256
    %299 = vmatprep.subr.mxu0 0.0
    %300 = vmatpush2.msra.mxu0 %v255
    %301 = vmatprep.subr.mxu0 0.0
    %302 = vmatpush2.msra.mxu0 %v254
    %303 = vmatprep.subr.mxu0 0.0
    %304 = vmatpush2.msra.mxu0 %v253
    %305 = vmatprep.subr.mxu0 0.0
    %306 = vmatpush2.msra.mxu0 %v252
    %307 = vmatprep.subr.mxu0 0.0
    %308 = vmatpush2.msra.mxu0 %v251
    %309 = vmatprep.subr.mxu0 0.0
    %310 = vmatpush2.msra.mxu0 %v250
    %311 = vmatprep.subr.mxu0 0.0
    %312 = vmatpush2.msra.mxu0 %v249
    %313 = vmatprep.subr.mxu0 0.0
    %314 = vmatpush2.msra.mxu0 %v248
    %315 = vmatprep.subr.mxu0 0.0
    %316 = vmatpush2.msra.mxu0 %v247
    %317 = vmatprep.subr.mxu0 0.0
    %318 = vmatpush2.msra.mxu0 %v246
    %319 = vmatprep.subr.mxu0 0.0
    %320 = vmatpush2.msra.mxu0 %v245
    %321 = vmatprep.subr.mxu0 0.0
    %322 = vmatpush2.msra.mxu0 %v244
    %323 = vmatprep.subr.mxu0 0.0
    %324 = vmatpush2.msra.mxu0 %v243
    %325 = vmatprep.mubr.f32.mxu0 %v224
    %326 = vmatmul.mubr.f32.gmra.mxu0 %v223
    %v327 = vpop.f32.mrf.mxu0
    %v328 = vadd.f32 0.0, %v327
    %v329 = vpop.f32.mrf.mxu0
    %330 = vmatprep.mubr.f32.mxu0 %v226
    %331 = vmatmul.mubr.f32.gmra.mxu0 %v225
    %v332 = vpop.f32.mrf.mxu0
    %v333 = vadd.f32 0.0, %v332
    %v334 = vpop.f32.mrf.mxu0
    %335 = vdwg.mxu0
    %v336 = vadd.f32 %v259, %v328
    %v337 = vadd.f32 %v260, %v333
    %338 = vst [vmem:[#allocation2] sm:$0xff] %v336
    %339 = vst [vmem:[#allocation2 + $0x8] sm:$0xff] %v337
    // Predicated region
    $region38: #{_ffn_call.1} parent=1 // pred_check
      %p340 = pneg %p62
    $region39: #{_ffn_call.1} parent=1 // pred_check_branch
      %342 = sbr.rel (%p340) target = $region41
    $region40: #{_ffn_call.1} parent=1 // pred_region
      %v343 = vld [vmem:[#allocation2] sm:$0xff]
      %v344 = vld [vmem:[#allocation2 + $0x8] sm:$0xff]
      %v345 = vld [vmem:[%s4] sm:$0x1]
      %v347 = vlaneseq
      %v348 = vshrl.u32 %v347, 7
      %v349 = vsub.s32 0, %v348
      %v350 = vrot.slane %v345, %v349
      %v352 = vadd.f32 %v343, %v350
      %v353 = vadd.f32 %v344, %v350
      %354 = vst [vmem:[#allocation9] sm:$0xff] %v352
      %355 = vst [vmem:[#allocation9 + $0x8] sm:$0xff] %v353
    $region41: #{_ffn_call.1} parent=1 // pred_fallthru
      _
    // Predicated region
    $region42: #{_ffn_call.1} parent=1 // pred_check
      _
    $region43: #{_ffn_call.1} parent=1 // pred_check_branch
      %357 = sbr.rel (0) target = $region45
    $region44: #{_ffn_call.1} parent=1 // pred_region
      %s359 = ssub.s32 256, 256
      %360 = vsyncadd [#allocation5], %s359
      %s361 = sshll.u32 [#allocation9], 4
      %s362 = int_to_ptr.vmem [resolvable:$true] %s361
      %367 = dma.vmem_to_hbm [thread:$0]  %s362, 256, %s5, [#allocation5], 128, 128, 8
    $region45: #{_ffn_call.1} parent=1 // pred_fallthru
      _
    // Predicated region
    $region46: #{_ffn_call.1} parent=1 // pred_check
      _
    $region47: #{_ffn_call.1} parent=1 // pred_check_branch
      %369 = sbr.rel (0) target = $region49
    $region48: #{_ffn_call.1} parent=1 // pred_region
      %370 = dma.done [#allocation5], 256
    $region49: #{_ffn_call.1} parent=1 // pred_fallthru
      _
    %371 = vsyncpa [#allocation4], 1
    %372 = vsyncpa [#allocation7], 1
    %373 = vsyncpa [#allocation5], 1

</llo_original>
